<compile_context>
chip_gen: v6e
topology: v6e:2x2x1
jax: 0.10.0
libtpu: 0.0.40
codegen_flags: <defaults>
</compile_context>

<pallas_src>
import jax
import jax.numpy as jnp
from jax import lax
from jax.experimental import pallas as pl
from jax.experimental.pallas import tpu as pltpu

EPS = 1e-8


def _elu_plus_one(x):
    # F.elu(x) + 1.0  ==  x + 1 for x > 0, exp(x) for x <= 0
    return jnp.where(x > 0, x + 1.0, jnp.exp(x))


def infini_memory_kernel(q_ref, k_ref, v_ref, attn_ref,
                         states_ref, mask_ref, z_ref, betas_ref, out_ref):
    # One grid step = one batch element; ALL heads live on the 128-wide lane axis.
    #   q/k/v/attn/out : (1, S, H*D)   lane-dense
    #   states         : (H*D, H*D)    block-diagonal per head
    #   mask           : (H*D, H*D)    block-diagonal ones (head segments)
    #   z, betas       : (1, H*D)
    q = q_ref[0]                 # (S, HD)
    k = k_ref[0]                 # (S, HD)
    v = v_ref[0]                 # (S, HD)
    attn = attn_ref[0]           # (S, HD)
    states = states_ref[...]     # (HD, HD)
    mask = mask_ref[...]         # (HD, HD)
    z = z_ref[...]               # (1, HD)
    betas = betas_ref[...]       # (1, HD)

    # ---- _compute_updates (use_delta=True) ----
    sigma_k = _elu_plus_one(k)                                            # (S, HD)
    # Per-head denominator sum_d sigma_k[s,h,d] * z[h,d], broadcast back over the
    # head's lanes via the block-diagonal ones mask (single lane-dense MXU op;
    # replaces the degenerate (S,D)x(D,1) dot + vector transpose).
    denom_k = jnp.dot(sigma_k * z, mask,
                      preferred_element_type=jnp.float32) + EPS           # (S, HD)
    retrieved_v = jnp.dot(sigma_k, states,
                          preferred_element_type=jnp.float32)             # (S, HD)
    retrieved_v = retrieved_v * pl.reciprocal(denom_k, approx=True)
    value_update = v - retrieved_v                                        # (S, HD)
    # sigma_k^T @ value_update without an explicit transpose: contract dim 0.
    delta = lax.dot_general(sigma_k, value_update,
                            dimension_numbers=(((0,), (0,)), ((), ())),
                            preferred_element_type=jnp.float32)           # (HD, HD)
    new_states = states + delta * mask            # mask keeps it block-diagonal
    new_z = z + jnp.sum(sigma_k, axis=0, keepdims=True)                   # (1, HD)

    # ---- _retrieve_memory ----
    sigma_q = _elu_plus_one(q)                                            # (S, HD)
    mem = jnp.dot(sigma_q, new_states, preferred_element_type=jnp.float32)
    norm = jnp.dot(sigma_q * new_z, mask,
                   preferred_element_type=jnp.float32) + EPS              # (S, HD)
    memory_output = mem * pl.reciprocal(norm, approx=True)

    # ---- _focus_attention ----  (lane-dense gating + full-width store)
    gate = jax.nn.sigmoid(betas)                                          # (1, HD)
    out_ref[0] = gate * memory_output + (1.0 - gate) * attn


def praxis_memory_forward(query, key, value, output,
                          memory_states, memory_z, betas):
    """query/key/value/output: (B,H,S,D); memory_states: (H,D,D);
    memory_z: (H,D); betas: (H,1,D)."""
    B, H, S, D = query.shape
    HD = H * D

    # Wrapper-side layout plumbing: (B,H,S,D) -> (B,S,H*D) so the kernel's last
    # dim fills the 128 lanes.
    def to_flat(x):
        return x.transpose(0, 2, 1, 3).reshape(B, S, HD)

    q_f, k_f, v_f, a_f = map(to_flat, (query, key, value, output))

    # Fold per-head parameters into a single lane-dense contraction:
    # block-diagonal state matrix + block-diagonal ones mask.
    eye_h = jnp.eye(H, dtype=memory_states.dtype)
    states_bd = (memory_states[:, :, None, :]
                 * eye_h[:, None, :, None]).reshape(HD, HD)               # (HD, HD)
    mask_bd = jnp.kron(eye_h, jnp.ones((D, D), memory_states.dtype))      # (HD, HD)
    z_row = memory_z.reshape(1, HD)
    betas_row = betas.reshape(1, HD)

    blk_seq = pl.BlockSpec((1, S, HD), lambda b: (b, 0, 0))
    blk_mat = pl.BlockSpec((HD, HD), lambda b: (0, 0))    # constant -> fetched once
    blk_row = pl.BlockSpec((1, HD), lambda b: (0, 0))

    out_flat = pl.pallas_call(
        infini_memory_kernel,
        out_shape=jax.ShapeDtypeStruct((B, S, HD), query.dtype),
        grid=(B,),
        in_specs=[blk_seq, blk_seq, blk_seq, blk_seq,   # q, k, v, attn
                  blk_mat, blk_mat,                     # states_bd, mask_bd
                  blk_row, blk_row],                    # z, betas
        out_specs=blk_seq,
        compiler_params=pltpu.CompilerParams(
            dimension_semantics=("parallel",)),         # v7x: one batch per TC
    )(q_f, k_f, v_f, a_f, states_bd, mask_bd, z_row, betas_row)

    return out_flat.reshape(B, S, H, D).transpose(0, 2, 1, 3)


def praxis_memory_reference(query, key, value, output,
                            memory_states, memory_z, betas):
    """Pure-JAX reference mirroring the PyTorch forward (module param shapes)."""
    sigma_k = _elu_plus_one(key)                                   # (B,H,S,D)
    denom = jnp.einsum('bhsd,hd->bhs', sigma_k, memory_z)[..., None] + EPS
    retrieved = jnp.einsum('bhsd,hde->bhse', sigma_k, memory_states) / denom
    value_update = value - retrieved
    new_states = memory_states[None] + jnp.einsum('bhsd,bhse->bhde',
                                                  sigma_k, value_update)
    new_z = memory_z[None] + sigma_k.sum(axis=2)                   # (B,H,D)
    sigma_q = _elu_plus_one(query)
    mem = jnp.einsum('bhsd,bhde->bhse', sigma_q, new_states)
    norm = jnp.einsum('bhsd,bhd->bhs', sigma_q, new_z)[..., None] + EPS
    memory_output = mem / norm
    gate = jax.nn.sigmoid(betas)[None]                             # (1,H,1,D)
    return gate * memory_output + (1.0 - gate) * output


if __name__ == "__main__":
    # Small config: hidden_size=128, num_heads=4 -> head_dim=32, differential=False
    B, H, S, D = 2, 4, 8, 32

    root = jax.random.PRNGKey(0)
    kq, kk, kv, ko, ks, kb = jax.random.split(root, 6)
    query = jax.random.normal(kq, (B, H, S, D), dtype=jnp.float32)
    key_t = jax.random.normal(kk, (B, H, S, D), dtype=jnp.float32)
    value = jax.random.normal(kv, (B, H, S, D), dtype=jnp.float32)
    attn_out = jax.random.normal(ko, (B, H, S, D), dtype=jnp.float32)

    # Module parameter shapes; states/betas are perturbed so the delta-retrieval and
    # gating paths are actually exercised, memory_z stays strictly positive (as init).
    memory_states = 0.05 * jax.random.normal(ks, (H, D, D), dtype=jnp.float32)
    memory_z = jnp.ones((H, D), dtype=jnp.float32) / D
    betas = 1.0 + 0.5 * jax.random.normal(kb, (H, 1, D), dtype=jnp.float32)

    out = praxis_memory_forward(query, key_t, value, attn_out,
                                memory_states, memory_z, betas)
    out = jax.block_until_ready(out)

    ref = praxis_memory_reference(query, key_t, value, attn_out,
                                  memory_states, memory_z, betas)
    ref = jax.block_until_ready(ref)

    assert out.shape == (B, H, S, D)
    err = float(jnp.max(jnp.abs(out - ref)))
    # Tolerance accounts for pl.reciprocal(approx=True) on the EUP.
    assert jnp.allclose(out, ref, atol=2e-3, rtol=2e-3), f"max abs err {err}"
    print("KERNEL_OK")
</pallas_src>

<mosaic_0001>
module attributes {stable_mosaic.version = 11 : i64} {
  func.func @infini_memory_kernel(%arg0: i32, %arg1: memref<1x8x128xf32, #tpu.memory_space<vmem>>, %arg2: memref<1x8x128xf32, #tpu.memory_space<vmem>>, %arg3: memref<1x8x128xf32, #tpu.memory_space<vmem>>, %arg4: memref<1x8x128xf32, #tpu.memory_space<vmem>>, %arg5: memref<128x128xf32, #tpu.memory_space<vmem>>, %arg6: memref<128x128xf32, #tpu.memory_space<vmem>>, %arg7: memref<1x128xf32, #tpu.memory_space<vmem>>, %arg8: memref<1x128xf32, #tpu.memory_space<vmem>>, %arg9: memref<1x8x128xf32, #tpu.memory_space<vmem>>) attributes {dimension_semantics = [#tpu.dimension_semantics<parallel>], iteration_bounds = array<i64: 2>, scalar_prefetch = 0 : i64, scratch_operands = 0 : i64, tpu.core_type = #tpu.core_type<tc>, window_params = [{transform_indices = @transform_0, window_bounds = array<i64: 1, 8, 128>}, {transform_indices = @transform_1, window_bounds = array<i64: 1, 8, 128>}, {transform_indices = @transform_2, window_bounds = array<i64: 1, 8, 128>}, {transform_indices = @transform_3, window_bounds = array<i64: 1, 8, 128>}, {pipeline_mode = #tpu.pipeline_mode<synchronous>, transform_indices = @transform_4, window_bounds = array<i64: 128, 128>}, {pipeline_mode = #tpu.pipeline_mode<synchronous>, transform_indices = @transform_5, window_bounds = array<i64: 128, 128>}, {pipeline_mode = #tpu.pipeline_mode<synchronous>, transform_indices = @transform_6, window_bounds = array<i64: 1, 128>}, {pipeline_mode = #tpu.pipeline_mode<synchronous>, transform_indices = @transform_7, window_bounds = array<i64: 1, 128>}, {transform_indices = @transform_8, window_bounds = array<i64: 1, 8, 128>}]} {
    %c0 = arith.constant 0 : index
    %c0_0 = arith.constant 0 : index
    %c0_1 = arith.constant 0 : index
    %0 = vector.load %arg1[%c0, %c0_0, %c0_1] : memref<1x8x128xf32, #tpu.memory_space<vmem>>, vector<1x8x128xf32>
    %1 = vector.shape_cast %0 : vector<1x8x128xf32> to vector<8x128xf32>
    %c0_2 = arith.constant 0 : index
    %c0_3 = arith.constant 0 : index
    %c0_4 = arith.constant 0 : index
    %2 = vector.load %arg2[%c0_2, %c0_3, %c0_4] : memref<1x8x128xf32, #tpu.memory_space<vmem>>, vector<1x8x128xf32>
    %3 = vector.shape_cast %2 : vector<1x8x128xf32> to vector<8x128xf32>
    %c0_5 = arith.constant 0 : index
    %c0_6 = arith.constant 0 : index
    %c0_7 = arith.constant 0 : index
    %4 = vector.load %arg3[%c0_5, %c0_6, %c0_7] : memref<1x8x128xf32, #tpu.memory_space<vmem>>, vector<1x8x128xf32>
    %5 = vector.shape_cast %4 : vector<1x8x128xf32> to vector<8x128xf32>
    %c0_8 = arith.constant 0 : index
    %c0_9 = arith.constant 0 : index
    %c0_10 = arith.constant 0 : index
    %6 = vector.load %arg4[%c0_8, %c0_9, %c0_10] : memref<1x8x128xf32, #tpu.memory_space<vmem>>, vector<1x8x128xf32>
    %7 = vector.shape_cast %6 : vector<1x8x128xf32> to vector<8x128xf32>
    %c0_11 = arith.constant 0 : index
    %c0_12 = arith.constant 0 : index
    %8 = vector.load %arg5[%c0_11, %c0_12] : memref<128x128xf32, #tpu.memory_space<vmem>>, vector<128x128xf32>
    %c0_13 = arith.constant 0 : index
    %c0_14 = arith.constant 0 : index
    %9 = vector.load %arg6[%c0_13, %c0_14] : memref<128x128xf32, #tpu.memory_space<vmem>>, vector<128x128xf32>
    %c0_15 = arith.constant 0 : index
    %c0_16 = arith.constant 0 : index
    %10 = vector.load %arg7[%c0_15, %c0_16] : memref<1x128xf32, #tpu.memory_space<vmem>>, vector<1x128xf32>
    %c0_17 = arith.constant 0 : index
    %c0_18 = arith.constant 0 : index
    %11 = vector.load %arg8[%c0_17, %c0_18] : memref<1x128xf32, #tpu.memory_space<vmem>>, vector<1x128xf32>
    %cst = arith.constant 0.000000e+00 : f32
    %12 = vector.broadcast %cst : f32 to vector<8x128xf32>
    %13 = arith.cmpf ogt, %3, %12 : vector<8x128xf32>
    %cst_19 = arith.constant 1.000000e+00 : f32
    %14 = vector.broadcast %cst_19 : f32 to vector<8x128xf32>
    %15 = arith.addf %3, %14 : vector<8x128xf32>
    %16 = math.exp %3 : vector<8x128xf32>
    %17 = arith.select %13, %15, %16 : vector<8x128xi1>, vector<8x128xf32>
    %18 = vector.broadcast %10 : vector<1x128xf32> to vector<8x128xf32>
    %19 = arith.mulf %17, %18 : vector<8x128xf32>
    %cst_20 = arith.constant dense<0.000000e+00> : vector<8x128xf32>
    %20 = tpu.matmul %19, %9, %cst_20 {dimension_numbers = #tpu.dot_dimension_numbers<[1], [0], [0], [1], [0, 0, 1, 1], [], []>} : vector<8x128xf32>, vector<128x128xf32>, vector<8x128xf32> -> vector<8x128xf32>
    %cst_21 = arith.constant 9.99999993E-9 : f32
    %21 = vector.broadcast %cst_21 : f32 to vector<8x128xf32>
    %22 = arith.addf %20, %21 : vector<8x128xf32>
    %cst_22 = arith.constant dense<0.000000e+00> : vector<8x128xf32>
    %23 = tpu.matmul %17, %8, %cst_22 {dimension_numbers = #tpu.dot_dimension_numbers<[1], [0], [0], [1], [0, 0, 1, 1], [], []>} : vector<8x128xf32>, vector<128x128xf32>, vector<8x128xf32> -> vector<8x128xf32>
    %24 = tpu.reciprocal %22 {approx = true} : vector<8x128xf32> -> vector<8x128xf32>
    %25 = arith.mulf %23, %24 : vector<8x128xf32>
    %26 = arith.subf %5, %25 : vector<8x128xf32>
    %cst_23 = arith.constant dense<0.000000e+00> : vector<128x128xf32>
    %27 = tpu.matmul %17, %26, %cst_23 {dimension_numbers = #tpu.dot_dimension_numbers<[0], [0], [1], [1], [0, 1, 1, 1], [], []>} : vector<8x128xf32>, vector<8x128xf32>, vector<128x128xf32> -> vector<128x128xf32>
    %28 = arith.mulf %27, %9 : vector<128x128xf32>
    %29 = arith.addf %8, %28 : vector<128x128xf32>
    %cst_24 = arith.constant dense<0.000000e+00> : vector<128xf32>
    %30 = vector.multi_reduction <add>, %17, %cst_24 [0] : vector<8x128xf32> to vector<128xf32>
    %31 = vector.shape_cast %30 : vector<128xf32> to vector<1x128xf32>
    %32 = arith.addf %10, %31 : vector<1x128xf32>
    %cst_25 = arith.constant 0.000000e+00 : f32
    %33 = vector.broadcast %cst_25 : f32 to vector<8x128xf32>
    %34 = arith.cmpf ogt, %1, %33 : vector<8x128xf32>
    %cst_26 = arith.constant 1.000000e+00 : f32
    %35 = vector.broadcast %cst_26 : f32 to vector<8x128xf32>
    %36 = arith.addf %1, %35 : vector<8x128xf32>
    %37 = math.exp %1 : vector<8x128xf32>
    %38 = arith.select %34, %36, %37 : vector<8x128xi1>, vector<8x128xf32>
    %cst_27 = arith.constant dense<0.000000e+00> : vector<8x128xf32>
    %39 = tpu.matmul %38, %29, %cst_27 {dimension_numbers = #tpu.dot_dimension_numbers<[1], [0], [0], [1], [0, 0, 1, 1], [], []>} : vector<8x128xf32>, vector<128x128xf32>, vector<8x128xf32> -> vector<8x128xf32>
    %40 = vector.broadcast %32 : vector<1x128xf32> to vector<8x128xf32>
    %41 = arith.mulf %38, %40 : vector<8x128xf32>
    %cst_28 = arith.constant dense<0.000000e+00> : vector<8x128xf32>
    %42 = tpu.matmul %41, %9, %cst_28 {dimension_numbers = #tpu.dot_dimension_numbers<[1], [0], [0], [1], [0, 0, 1, 1], [], []>} : vector<8x128xf32>, vector<128x128xf32>, vector<8x128xf32> -> vector<8x128xf32>
    %cst_29 = arith.constant 9.99999993E-9 : f32
    %43 = vector.broadcast %cst_29 : f32 to vector<8x128xf32>
    %44 = arith.addf %42, %43 : vector<8x128xf32>
    %45 = tpu.reciprocal %44 {approx = true} : vector<8x128xf32> -> vector<8x128xf32>
    %46 = arith.mulf %39, %45 : vector<8x128xf32>
    %47 = arith.negf %11 : vector<1x128xf32>
    %48 = math.exp %47 : vector<1x128xf32>
    %cst_30 = arith.constant 1.000000e+00 : f32
    %49 = vector.broadcast %cst_30 : f32 to vector<1x128xf32>
    %50 = arith.addf %49, %48 : vector<1x128xf32>
    %51 = arith.divf %49, %50 : vector<1x128xf32>
    %52 = vector.broadcast %51 : vector<1x128xf32> to vector<8x128xf32>
    %53 = arith.mulf %52, %46 : vector<8x128xf32>
    %cst_31 = arith.constant 1.000000e+00 : f32
    %54 = vector.broadcast %cst_31 : f32 to vector<1x128xf32>
    %55 = arith.subf %54, %51 : vector<1x128xf32>
    %56 = vector.broadcast %55 : vector<1x128xf32> to vector<8x128xf32>
    %57 = arith.mulf %56, %7 : vector<8x128xf32>
    %58 = arith.addf %53, %57 : vector<8x128xf32>
    %c0_32 = arith.constant 0 : index
    %c0_33 = arith.constant 0 : index
    %c0_34 = arith.constant 0 : index
    %59 = vector.load %arg9[%c0_32, %c0_33, %c0_34] : memref<1x8x128xf32, #tpu.memory_space<vmem>>, vector<1x8x128xf32>
    %60 = vector.shape_cast %59 : vector<1x8x128xf32> to vector<8x128xf32>
    %61 = vector.shape_cast %58 : vector<8x128xf32> to vector<1x8x128xf32>
    tpu.vector_store %arg9[%c0_32, %c0_33, %c0_34], %61 {strides = array<i32>} : memref<1x8x128xf32, #tpu.memory_space<vmem>>, vector<1x8x128xf32>,
    return
  }
  func.func @transform_0(%arg0: i32) -> (i32, i32, i32) {
    %c0_i32 = arith.constant 0 : i32
    %c0_i32_0 = arith.constant 0 : i32
    %c0_i32_1 = arith.constant 0 : i32
    return %arg0, %c0_i32, %c0_i32_0 : i32, i32, i32
  }
  func.func @transform_1(%arg0: i32) -> (i32, i32, i32) {
    %c0_i32 = arith.constant 0 : i32
    %c0_i32_0 = arith.constant 0 : i32
    %c0_i32_1 = arith.constant 0 : i32
    return %arg0, %c0_i32, %c0_i32_0 : i32, i32, i32
  }
  func.func @transform_2(%arg0: i32) -> (i32, i32, i32) {
    %c0_i32 = arith.constant 0 : i32
    %c0_i32_0 = arith.constant 0 : i32
    %c0_i32_1 = arith.constant 0 : i32
    return %arg0, %c0_i32, %c0_i32_0 : i32, i32, i32
  }
  func.func @transform_3(%arg0: i32) -> (i32, i32, i32) {
    %c0_i32 = arith.constant 0 : i32
    %c0_i32_0 = arith.constant 0 : i32
    %c0_i32_1 = arith.constant 0 : i32
    return %arg0, %c0_i32, %c0_i32_0 : i32, i32, i32
  }
  func.func @transform_4(%arg0: i32) -> (i32, i32) {
    %c0_i32 = arith.constant 0 : i32
    %c0_i32_0 = arith.constant 0 : i32
    %c0_i32_1 = arith.constant 0 : i32
    return %c0_i32, %c0_i32_0 : i32, i32
  }
  func.func @transform_5(%arg0: i32) -> (i32, i32) {
    %c0_i32 = arith.constant 0 : i32
    %c0_i32_0 = arith.constant 0 : i32
    %c0_i32_1 = arith.constant 0 : i32
    return %c0_i32, %c0_i32_0 : i32, i32
  }
  func.func @transform_6(%arg0: i32) -> (i32, i32) {
    %c0_i32 = arith.constant 0 : i32
    %c0_i32_0 = arith.constant 0 : i32
    %c0_i32_1 = arith.constant 0 : i32
    return %c0_i32, %c0_i32_0 : i32, i32
  }
  func.func @transform_7(%arg0: i32) -> (i32, i32) {
    %c0_i32 = arith.constant 0 : i32
    %c0_i32_0 = arith.constant 0 : i32
    %c0_i32_1 = arith.constant 0 : i32
    return %c0_i32, %c0_i32_0 : i32, i32
  }
  func.func @transform_8(%arg0: i32) -> (i32, i32, i32) {
    %c0_i32 = arith.constant 0 : i32
    %c0_i32_0 = arith.constant 0 : i32
    %c0_i32_1 = arith.constant 0 : i32
    return %arg0, %c0_i32, %c0_i32_0 : i32, i32, i32
  }
}

</mosaic_0001>

<llo_original>
// kernel: tpu_custom_call.1
$region0: #{tpu_custom_call.1}
  #allocation0 [shape = 'u32[]', space=smem, size = 0x4, offset = 0x4, fixed_abs, tag = 'smem constant byte address 0x4 - core index']
  #allocation1 [shape = 'u32[144,128]{1,0:T(1,128)}', space=vmem, size = 0x12000, scoped, tag = 'internal scratch']
  %s0 = inlined_call_operand.hbm [shape: f32[2,8,128], index: 0, kind: input, shape index: {}]
  %s1 = inlined_call_operand.hbm [shape: f32[2,8,128], index: 1, kind: input, shape index: {}]
  %s2 = inlined_call_operand.hbm [shape: f32[2,8,128], index: 2, kind: input, shape index: {}]
  %s3 = inlined_call_operand.hbm [shape: f32[2,8,128], index: 3, kind: input, shape index: {}]
  %s4 = inlined_call_operand.hbm [shape: f32[128,128], index: 4, kind: input, shape index: {}]
  %s5 = inlined_call_operand.hbm [shape: f32[128,128], index: 5, kind: input, shape index: {}]
  %s6 = inlined_call_operand.vmem [shape: f32[1,128], index: 6, kind: input, shape index: {}]
  %s7 = inlined_call_operand.vmem [shape: f32[1,128], index: 7, kind: input, shape index: {}]
  %s8 = inlined_call_operand.hbm [shape: f32[2,8,128], index: 8, kind: output, shape index: {}]
  %s9 = sld [smem:[#allocation0]]
  $region89: #{tpu_custom_call.1} parent=0
    _
  %s11 = ssub.s32 1, %s9
  %s12 = scalar_select 0, %s11, %s9
  $region1: #{tpu_custom_call.1} parent=0
    #allocation2 [shape = 'u8[8192]{0}', space=vmem, size = 0x2000, scoped, tag = 'input window, operand 0']
    #allocation3 [shape = 's32[2]{0}', space=sflag, size = 0x8, scoped, tag = 'scoped memory for tpu_custom_call.1']
    #allocation4 [shape = 's32[2]{0}', space=sflag, size = 0x8, scoped, tag = 'scoped memory for tpu_custom_call.1']
    #allocation5 [shape = 'u8[8192]{0}', space=vmem, size = 0x2000, scoped, tag = 'input window, operand 1']
    #allocation6 [shape = 's32[2]{0}', space=sflag, size = 0x8, scoped, tag = 'scoped memory for tpu_custom_call.1']
    #allocation7 [shape = 'u8[8192]{0}', space=vmem, size = 0x2000, scoped, tag = 'input window, operand 2']
    #allocation8 [shape = 'u8[8192]{0}', space=vmem, size = 0x2000, scoped, tag = 'input window, operand 3']
    #allocation9 [shape = 's32[2]{0}', space=sflag, size = 0x8, scoped, tag = 'scoped memory for tpu_custom_call.1']
    #allocation10 [shape = 'u8[65536]{0}', space=vmem, size = 0x10000, scoped, tag = 'input window, operand 4, single buffered']
    #allocation11 [shape = 'u8[65536]{0}', space=vmem, size = 0x10000, scoped, tag = 'input window, operand 5, single buffered']
    #allocation12 [shape = 's32[1]{0}', space=sflag, size = 0x4, scoped, tag = 'scoped memory for tpu_custom_call.1']
    #allocation13 [shape = 'u8[8192]{0}', space=vmem, size = 0x2000, scoped, tag = 'output window, operand 0']
    %13 = vsyncpa [#allocation3], 0
    %s14 = scalar_lea.sflag [#allocation3], 1
    %15 = vsyncpa %s14, 0
    %16 = vsyncpa [#allocation6], 0
    %s17 = scalar_lea.sflag [#allocation6], 1
    %18 = vsyncpa %s17, 0
    %19 = vsyncpa [#allocation9], 0
    %s20 = scalar_lea.sflag [#allocation9], 1
    %21 = vsyncpa %s20, 0
    %22 = vsyncpa [#allocation12], 0
    %23 = vsyncpa [#allocation4], 0
    %s24 = scalar_lea.sflag [#allocation4], 1
    %25 = vsyncpa %s24, 0
    loop: start=0, step=1, limit=4
    $region2: #{tpu_custom_call.1} parent=1 // loop_pre_header
      _
    $region3: #{tpu_custom_call.1} parent=1 // loop_header
      %s27 = sphi 0, %s31
      %p28 = scmp.ge.s32.totalorder %s27, 4
      %s37 = sphi 0, %s39
      %s40 = sphi 0, %s37
      %s41 = sphi 0, %s40
      %s57 = sphi 0, %s41
      %s63 = sphi 0, %s65
      %s66 = sphi 0, %s63
      %s67 = sphi 0, %s66
      %s83 = sphi 0, %s67
      %s89 = sphi 0, %s91
      %s92 = sphi 0, %s89
      %s93 = sphi 0, %s92
      %s109 = sphi 0, %s93
      %s115 = sphi 0, %s117
      %s118 = sphi 0, %s115
      %s119 = sphi 0, %s118
      %s135 = sphi 0, %s119
      %s139 = sphi 0, %s139
      %s141 = sphi 0, %s139
      %s142 = sphi 0, %s141
      %s156 = sphi 0, %s142
      %s160 = sphi 0, %s160
      %s162 = sphi 0, %s160
      %s163 = sphi 0, %s162
      %s177 = sphi 0, %s163
      %s181 = sphi 0, %s181
      %s183 = sphi 0, %s181
      %s184 = sphi 0, %s183
      %s198 = sphi 0, %s184
      %s202 = sphi 0, %s202
      %s204 = sphi 0, %s202
      %s205 = sphi 0, %s204
      %s219 = sphi 0, %s205
      %s225 = sphi 0, %s227
      %s228 = sphi 0, %s225
      %s229 = sphi 0, %s228
      %s245 = sphi 0, %s229
    $region4: #{tpu_custom_call.1} parent=1 // loop_header_branch
      %30 = sbr.rel (%p28) target = $region8
    $region5: #{tpu_custom_call.1} parent=1 // loop_body
      %s32 = ssub.s32 %s27, 1
      %s33 = ssub.s32 %s27, 2
      %s34 = sadd.s32 %s27, 1
      %s35 = ssub.s32 %s27, %s34
      %p36 = scmp.eq.s32.totalorder %s35, 0
      %s38 = sadd.s32 %s37, 1
      %s39 = scalar_select %p36, %s37, %s38
      %p42 = pneg %p36
      %p43 = scmp.eq.s32.totalorder %s27, 1
      %p44 = por %p42, %p43
      %p45 = scmp.ne.s32.totalorder %s37, %s40
      %p46 = scmp.eq.s32.totalorder %s27, 0
      %p47 = por %p45, %p46
      %p48 = scmp.ne.s32.totalorder %s37, %s40
      %p49 = scmp.eq.s32.totalorder %s32, 1
      %p50 = por %p48, %p49
      %p51 = scmp.ne.s32.totalorder %s40, %s41
      %p52 = scmp.eq.s32.totalorder %s32, 0
      %p53 = por %p51, %p52
      %p54 = scmp.ne.s32.totalorder %s40, %s41
      %p55 = scmp.eq.s32.totalorder %s33, 1
      %p56 = por %p54, %p55
      %p58 = scmp.ne.s32.totalorder %s41, %s57
      %p59 = scmp.eq.s32.totalorder %s33, 0
      %p60 = por %p58, %p59
      %s61 = ssub.s32 %s27, %s34
      %p62 = scmp.eq.s32.totalorder %s61, 0
      %s64 = sadd.s32 %s63, 1
      %s65 = scalar_select %p62, %s63, %s64
      %p68 = pneg %p62
      %p69 = scmp.eq.s32.totalorder %s27, 1
      %p70 = por %p68, %p69
      %p71 = scmp.ne.s32.totalorder %s63, %s66
      %p72 = scmp.eq.s32.totalorder %s27, 0
      %p73 = por %p71, %p72
      %p74 = scmp.ne.s32.totalorder %s63, %s66
      %p75 = scmp.eq.s32.totalorder %s32, 1
      %p76 = por %p74, %p75
      %p77 = scmp.ne.s32.totalorder %s66, %s67
      %p78 = scmp.eq.s32.totalorder %s32, 0
      %p79 = por %p77, %p78
      %p80 = scmp.ne.s32.totalorder %s66, %s67
      %p81 = scmp.eq.s32.totalorder %s33, 1
      %p82 = por %p80, %p81
      %p84 = scmp.ne.s32.totalorder %s67, %s83
      %p85 = scmp.eq.s32.totalorder %s33, 0
      %p86 = por %p84, %p85
      %s87 = ssub.s32 %s27, %s34
      %p88 = scmp.eq.s32.totalorder %s87, 0
      %s90 = sadd.s32 %s89, 1
      %s91 = scalar_select %p88, %s89, %s90
      %p94 = pneg %p88
      %p95 = scmp.eq.s32.totalorder %s27, 1
      %p96 = por %p94, %p95
      %p97 = scmp.ne.s32.totalorder %s89, %s92
      %p98 = scmp.eq.s32.totalorder %s27, 0
      %p99 = por %p97, %p98
      %p100 = scmp.ne.s32.totalorder %s89, %s92
      %p101 = scmp.eq.s32.totalorder %s32, 1
      %p102 = por %p100, %p101
      %p103 = scmp.ne.s32.totalorder %s92, %s93
      %p104 = scmp.eq.s32.totalorder %s32, 0
      %p105 = por %p103, %p104
      %p106 = scmp.ne.s32.totalorder %s92, %s93
      %p107 = scmp.eq.s32.totalorder %s33, 1
      %p108 = por %p106, %p107
      %p110 = scmp.ne.s32.totalorder %s93, %s109
      %p111 = scmp.eq.s32.totalorder %s33, 0
      %p112 = por %p110, %p111
      %s113 = ssub.s32 %s27, %s34
      %p114 = scmp.eq.s32.totalorder %s113, 0
      %s116 = sadd.s32 %s115, 1
      %s117 = scalar_select %p114, %s115, %s116
      %p120 = pneg %p114
      %p121 = scmp.eq.s32.totalorder %s27, 1
      %p122 = por %p120, %p121
      %p123 = scmp.ne.s32.totalorder %s115, %s118
      %p124 = scmp.eq.s32.totalorder %s27, 0
      %p125 = por %p123, %p124
      %p126 = scmp.ne.s32.totalorder %s115, %s118
      %p127 = scmp.eq.s32.totalorder %s32, 1
      %p128 = por %p126, %p127
      %p129 = scmp.ne.s32.totalorder %s118, %s119
      %p130 = scmp.eq.s32.totalorder %s32, 0
      %p131 = por %p129, %p130
      %p132 = scmp.ne.s32.totalorder %s118, %s119
      %p133 = scmp.eq.s32.totalorder %s33, 1
      %p134 = por %p132, %p133
      %p136 = scmp.ne.s32.totalorder %s119, %s135
      %p137 = scmp.eq.s32.totalorder %s33, 0
      %p138 = por %p136, %p137
      %s140 = sadd.s32 %s139, 1
      %p143 = scmp.eq.s32.totalorder %s27, 1
      %p144 = scmp.ne.s32.totalorder %s139, %s141
      %p145 = scmp.eq.s32.totalorder %s27, 0
      %p146 = por %p144, %p145
      %p147 = scmp.ne.s32.totalorder %s139, %s141
      %p148 = scmp.eq.s32.totalorder %s32, 1
      %p149 = por %p147, %p148
      %p150 = scmp.ne.s32.totalorder %s141, %s142
      %p151 = scmp.eq.s32.totalorder %s32, 0
      %p152 = por %p150, %p151
      %p153 = scmp.ne.s32.totalorder %s141, %s142
      %p154 = scmp.eq.s32.totalorder %s33, 1
      %p155 = por %p153, %p154
      %p157 = scmp.ne.s32.totalorder %s142, %s156
      %p158 = scmp.eq.s32.totalorder %s33, 0
      %p159 = por %p157, %p158
      %s161 = sadd.s32 %s160, 1
      %p164 = scmp.eq.s32.totalorder %s27, 1
      %p165 = scmp.ne.s32.totalorder %s160, %s162
      %p166 = scmp.eq.s32.totalorder %s27, 0
      %p167 = por %p165, %p166
      %p168 = scmp.ne.s32.totalorder %s160, %s162
      %p169 = scmp.eq.s32.totalorder %s32, 1
      %p170 = por %p168, %p169
      %p171 = scmp.ne.s32.totalorder %s162, %s163
      %p172 = scmp.eq.s32.totalorder %s32, 0
      %p173 = por %p171, %p172
      %p174 = scmp.ne.s32.totalorder %s162, %s163
      %p175 = scmp.eq.s32.totalorder %s33, 1
      %p176 = por %p174, %p175
      %p178 = scmp.ne.s32.totalorder %s163, %s177
      %p179 = scmp.eq.s32.totalorder %s33, 0
      %p180 = por %p178, %p179
      %s182 = sadd.s32 %s181, 1
      %p185 = scmp.eq.s32.totalorder %s27, 1
      %p186 = scmp.ne.s32.totalorder %s181, %s183
      %p187 = scmp.eq.s32.totalorder %s27, 0
      %p188 = por %p186, %p187
      %p189 = scmp.ne.s32.totalorder %s181, %s183
      %p190 = scmp.eq.s32.totalorder %s32, 1
      %p191 = por %p189, %p190
      %p192 = scmp.ne.s32.totalorder %s183, %s184
      %p193 = scmp.eq.s32.totalorder %s32, 0
      %p194 = por %p192, %p193
      %p195 = scmp.ne.s32.totalorder %s183, %s184
      %p196 = scmp.eq.s32.totalorder %s33, 1
      %p197 = por %p195, %p196
      %p199 = scmp.ne.s32.totalorder %s184, %s198
      %p200 = scmp.eq.s32.totalorder %s33, 0
      %p201 = por %p199, %p200
      %s203 = sadd.s32 %s202, 1
      %p206 = scmp.eq.s32.totalorder %s27, 1
      %p207 = scmp.ne.s32.totalorder %s202, %s204
      %p208 = scmp.eq.s32.totalorder %s27, 0
      %p209 = por %p207, %p208
      %p210 = scmp.ne.s32.totalorder %s202, %s204
      %p211 = scmp.eq.s32.totalorder %s32, 1
      %p212 = por %p210, %p211
      %p213 = scmp.ne.s32.totalorder %s204, %s205
      %p214 = scmp.eq.s32.totalorder %s32, 0
      %p215 = por %p213, %p214
      %p216 = scmp.ne.s32.totalorder %s204, %s205
      %p217 = scmp.eq.s32.totalorder %s33, 1
      %p218 = por %p216, %p217
      %p220 = scmp.ne.s32.totalorder %s205, %s219
      %p221 = scmp.eq.s32.totalorder %s33, 0
      %p222 = por %p220, %p221
      %s223 = ssub.s32 %s27, %s34
      %p224 = scmp.eq.s32.totalorder %s223, 0
      %s226 = sadd.s32 %s225, 1
      %s227 = scalar_select %p224, %s225, %s226
      %p230 = pneg %p224
      %p231 = scmp.eq.s32.totalorder %s27, 1
      %p232 = por %p230, %p231
      %p233 = scmp.ne.s32.totalorder %s225, %s228
      %p234 = scmp.eq.s32.totalorder %s27, 0
      %p235 = por %p233, %p234
      %p236 = scmp.ne.s32.totalorder %s225, %s228
      %p237 = scmp.eq.s32.totalorder %s32, 1
      %p238 = por %p236, %p237
      %p239 = scmp.ne.s32.totalorder %s228, %s229
      %p240 = scmp.eq.s32.totalorder %s32, 0
      %p241 = por %p239, %p240
      %p242 = scmp.ne.s32.totalorder %s228, %s229
      %p243 = scmp.eq.s32.totalorder %s33, 1
      %p244 = por %p242, %p243
      %p246 = scmp.ne.s32.totalorder %s229, %s245
      %p247 = scmp.eq.s32.totalorder %s33, 0
      %p248 = por %p246, %p247
      %p249 = scmp.le.s32.totalorder 1, %s27
      %p250 = scmp.lt.s32.totalorder %s27, 3
      %p251 = pnand %p249, %p250
      %p252 = pneg %p251
      // Predicated region
      $region9: #{tpu_custom_call.1} parent=5 // pred_check
        _
      $region10: #{tpu_custom_call.1} parent=5 // pred_check_branch
        %254 = sbr.rel (%p251) target = $region12
      $region11: #{tpu_custom_call.1} parent=5 // pred_region
        %s255 = ssub.s32 %s27, 1
        // Predicated region
        $region13: #{tpu_custom_call.1} parent=11 // pred_check
          %p256 = pneg %p152
        $region14: #{tpu_custom_call.1} parent=11 // pred_check_branch
          %258 = sbr.rel (%p256) target = $region16
        $region15: #{tpu_custom_call.1} parent=11 // pred_region
          %s260 = ssub.s32 2048, 2048
          %261 = vsyncadd [#allocation9], %s260
          %s262 = sshll.u32 [#allocation10], 4
          %s263 = int_to_ptr.vmem [resolvable:$true] %s262
          %268 = dma.hbm_to_vmem [thread:$0]  %s4, 2048, %s263, [#allocation9], 128, 128, 8
        $region16: #{tpu_custom_call.1} parent=11 // pred_fallthru
          _
        // Predicated region
        $region17: #{tpu_custom_call.1} parent=11 // pred_check
          %p269 = pneg %p173
        $region18: #{tpu_custom_call.1} parent=11 // pred_check_branch
          %271 = sbr.rel (%p269) target = $region20
        $region19: #{tpu_custom_call.1} parent=11 // pred_region
          %s273 = ssub.s32 2048, 2048
          %274 = vsyncadd [#allocation12], %s273
          %s275 = sshll.u32 [#allocation11], 4
          %s276 = int_to_ptr.vmem [resolvable:$true] %s275
          %281 = dma.hbm_to_vmem [thread:$0]  %s5, 2048, %s276, [#allocation12], 128, 128, 8
        $region20: #{tpu_custom_call.1} parent=11 // pred_fallthru
          _
        // Predicated region
        $region21: #{tpu_custom_call.1} parent=11 // pred_check
          %p282 = pneg %p194
        $region22: #{tpu_custom_call.1} parent=11 // pred_check_branch
          %284 = sbr.rel (%p282) target = $region24
        $region23: #{tpu_custom_call.1} parent=11 // pred_region
          _
        $region24: #{tpu_custom_call.1} parent=11 // pred_fallthru
          _
        // Predicated region
        $region25: #{tpu_custom_call.1} parent=11 // pred_check
          %p285 = pneg %p215
        $region26: #{tpu_custom_call.1} parent=11 // pred_check_branch
          %287 = sbr.rel (%p285) target = $region28
        $region27: #{tpu_custom_call.1} parent=11 // pred_region
          _
        $region28: #{tpu_custom_call.1} parent=11 // pred_fallthru
          _
      $region12: #{tpu_custom_call.1} parent=5 // pred_fallthru
        _
      %p288 = scmp.lt.s32.totalorder %s27, 2
      // Predicated region
      $region29: #{tpu_custom_call.1} parent=5 // pred_check
        %p289 = pneg %p288
      $region30: #{tpu_custom_call.1} parent=5 // pred_check_branch
        %291 = sbr.rel (%p289) target = $region32
      $region31: #{tpu_custom_call.1} parent=5 // pred_region
        // Predicated region
        $region33: #{tpu_custom_call.1} parent=31 // pred_check
          %p292 = pneg %p47
        $region34: #{tpu_custom_call.1} parent=31 // pred_check_branch
          %294 = sbr.rel (%p292) target = $region36
        $region35: #{tpu_custom_call.1} parent=31 // pred_region
          %s295 = sand.u32 %s37, 1
          %s296 = scalar_lea.sflag [#allocation3], %s295
          %s297 = sand.u32 %s37, 1
          %s298 = smul.addr %s297, 8
          %s299 = scalar_lea.vmem [#allocation2], %s298
          %s301 = ssub.s32 128, 128
          %302 = vsyncadd %s296, %s301
          %s303 = smul.addr %s27, 128
          %s304 = scalar_lea.hbm %s0, %s303
          %s306 = sshll.u32 %s299, 4
          %s307 = int_to_ptr.vmem [resolvable:$true] %s306
          %309 = dma.hbm_to_vmem [thread:$0]  %s304, 128, %s307, %s296
        $region36: #{tpu_custom_call.1} parent=31 // pred_fallthru
          _
        // Predicated region
        $region37: #{tpu_custom_call.1} parent=31 // pred_check
          %p310 = pneg %p73
        $region38: #{tpu_custom_call.1} parent=31 // pred_check_branch
          %312 = sbr.rel (%p310) target = $region40
        $region39: #{tpu_custom_call.1} parent=31 // pred_region
          %s313 = sand.u32 %s27, 1
          %s314 = scalar_lea.sflag [#allocation6], %s313
          %s315 = sand.u32 %s63, 1
          %s316 = smul.addr %s315, 8
          %s317 = scalar_lea.vmem [#allocation5], %s316
          %s319 = ssub.s32 128, 128
          %320 = vsyncadd %s314, %s319
          %s321 = smul.addr %s27, 128
          %s322 = scalar_lea.hbm %s1, %s321
          %s324 = sshll.u32 %s317, 4
          %s325 = int_to_ptr.vmem [resolvable:$true] %s324
          %327 = dma.hbm_to_vmem [thread:$0]  %s322, 128, %s325, %s314
        $region40: #{tpu_custom_call.1} parent=31 // pred_fallthru
          _
        // Predicated region
        $region41: #{tpu_custom_call.1} parent=31 // pred_check
          %p328 = pneg %p99
        $region42: #{tpu_custom_call.1} parent=31 // pred_check_branch
          %330 = sbr.rel (%p328) target = $region44
        $region43: #{tpu_custom_call.1} parent=31 // pred_region
          %s331 = sand.u32 %s27, 1
          %s332 = scalar_lea.sflag [#allocation6], %s331
          %s333 = sand.u32 %s89, 1
          %s334 = smul.addr %s333, 8
          %s335 = scalar_lea.vmem [#allocation7], %s334
          %s337 = ssub.s32 128, 128
          %338 = vsyncadd %s332, %s337
          %s339 = smul.addr %s27, 128
          %s340 = scalar_lea.hbm %s2, %s339
          %s342 = sshll.u32 %s335, 4
          %s343 = int_to_ptr.vmem [resolvable:$true] %s342
          %345 = dma.hbm_to_vmem [thread:$0]  %s340, 128, %s343, %s332
        $region44: #{tpu_custom_call.1} parent=31 // pred_fallthru
          _
        // Predicated region
        $region45: #{tpu_custom_call.1} parent=31 // pred_check
          %p346 = pneg %p125
        $region46: #{tpu_custom_call.1} parent=31 // pred_check_branch
          %348 = sbr.rel (%p346) target = $region48
        $region47: #{tpu_custom_call.1} parent=31 // pred_region
          %s349 = sand.u32 %s27, 1
          %s350 = scalar_lea.sflag [#allocation9], %s349
          %s351 = sand.u32 %s115, 1
          %s352 = smul.addr %s351, 8
          %s353 = scalar_lea.vmem [#allocation8], %s352
          %s355 = ssub.s32 128, 128
          %356 = vsyncadd %s350, %s355
          %s357 = smul.addr %s27, 128
          %s358 = scalar_lea.hbm %s3, %s357
          %s360 = sshll.u32 %s353, 4
          %s361 = int_to_ptr.vmem [resolvable:$true] %s360
          %363 = dma.hbm_to_vmem [thread:$0]  %s358, 128, %s361, %s350
        $region48: #{tpu_custom_call.1} parent=31 // pred_fallthru
          _
      $region32: #{tpu_custom_call.1} parent=5 // pred_fallthru
        _
      %p364 = scmp.le.s32.totalorder 1, %s27
      %p365 = scmp.lt.s32.totalorder %s27, 3
      %p366 = pnand %p364, %p365
      %p367 = pneg %p366
      // Predicated region
      $region49: #{tpu_custom_call.1} parent=5 // pred_check
        _
      $region50: #{tpu_custom_call.1} parent=5 // pred_check_branch
        %369 = sbr.rel (%p366) target = $region52
      $region51: #{tpu_custom_call.1} parent=5 // pred_region
        %s370 = ssub.s32 %s27, 1
        %s371 = sand.u32 %s40, 1
        %s372 = scalar_lea.sflag [#allocation3], %s371
        %s373 = sand.u32 %s40, 1
        %s374 = smul.addr %s373, 8
        %s375 = scalar_lea.vmem [#allocation2], %s374
        // Predicated region
        $region53: #{tpu_custom_call.1} parent=51 // pred_check
          %p376 = pneg %p53
        $region54: #{tpu_custom_call.1} parent=51 // pred_check_branch
          %378 = sbr.rel (%p376) target = $region56
        $region55: #{tpu_custom_call.1} parent=51 // pred_region
          %379 = dma.done %s372, 128
        $region56: #{tpu_custom_call.1} parent=51 // pred_fallthru
          _
        %s380 = sand.u32 %s32, 1
        %s381 = scalar_lea.sflag [#allocation6], %s380
        %s382 = sand.u32 %s66, 1
        %s383 = smul.addr %s382, 8
        %s384 = scalar_lea.vmem [#allocation5], %s383
        // Predicated region
        $region57: #{tpu_custom_call.1} parent=51 // pred_check
          %p385 = pneg %p79
        $region58: #{tpu_custom_call.1} parent=51 // pred_check_branch
          %387 = sbr.rel (%p385) target = $region60
        $region59: #{tpu_custom_call.1} parent=51 // pred_region
          %388 = dma.done %s381, 128
        $region60: #{tpu_custom_call.1} parent=51 // pred_fallthru
          _
        %s389 = sand.u32 %s32, 1
        %s390 = scalar_lea.sflag [#allocation6], %s389
        %s391 = sand.u32 %s92, 1
        %s392 = smul.addr %s391, 8
        %s393 = scalar_lea.vmem [#allocation7], %s392
        // Predicated region
        $region61: #{tpu_custom_call.1} parent=51 // pred_check
          %p394 = pneg %p105
        $region62: #{tpu_custom_call.1} parent=51 // pred_check_branch
          %396 = sbr.rel (%p394) target = $region64
        $region63: #{tpu_custom_call.1} parent=51 // pred_region
          %397 = dma.done %s390, 128
        $region64: #{tpu_custom_call.1} parent=51 // pred_fallthru
          _
        %s398 = sand.u32 %s32, 1
        %s399 = scalar_lea.sflag [#allocation9], %s398
        %s400 = sand.u32 %s118, 1
        %s401 = smul.addr %s400, 8
        %s402 = scalar_lea.vmem [#allocation8], %s401
        // Predicated region
        $region65: #{tpu_custom_call.1} parent=51 // pred_check
          %p403 = pneg %p131
        $region66: #{tpu_custom_call.1} parent=51 // pred_check_branch
          %405 = sbr.rel (%p403) target = $region68
        $region67: #{tpu_custom_call.1} parent=51 // pred_region
          %406 = dma.done %s399, 128
        $region68: #{tpu_custom_call.1} parent=51 // pred_fallthru
          _
        // Predicated region
        $region69: #{tpu_custom_call.1} parent=51 // pred_check
          %p407 = pneg %p152
        $region70: #{tpu_custom_call.1} parent=51 // pred_check_branch
          %409 = sbr.rel (%p407) target = $region72
        $region71: #{tpu_custom_call.1} parent=51 // pred_region
          %410 = dma.done [#allocation9], 2048
        $region72: #{tpu_custom_call.1} parent=51 // pred_fallthru
          _
        // Predicated region
        $region73: #{tpu_custom_call.1} parent=51 // pred_check
          %p411 = pneg %p173
        $region74: #{tpu_custom_call.1} parent=51 // pred_check_branch
          %413 = sbr.rel (%p411) target = $region76
        $region75: #{tpu_custom_call.1} parent=51 // pred_region
          %414 = dma.done [#allocation12], 2048
        $region76: #{tpu_custom_call.1} parent=51 // pred_fallthru
          _
        %s415 = sand.u32 %s40, 1
        %s416 = scalar_lea.sflag [#allocation3], %s415
        %s417 = sand.u32 %s40, 1
        %s418 = smul.addr %s417, 8
        %s419 = scalar_lea.vmem [#allocation2], %s418
        %p420 = pneg %p53
        %p421 = pneg %p50
        %s422 = sand.u32 %s32, 1
        %s423 = scalar_lea.sflag [#allocation6], %s422
        %s424 = sand.u32 %s66, 1
        %s425 = smul.addr %s424, 8
        %s426 = scalar_lea.vmem [#allocation5], %s425
        %p427 = pneg %p79
        %p428 = pneg %p76
        %s429 = sand.u32 %s32, 1
        %s430 = scalar_lea.sflag [#allocation6], %s429
        %s431 = sand.u32 %s92, 1
        %s432 = smul.addr %s431, 8
        %s433 = scalar_lea.vmem [#allocation7], %s432
        %p434 = pneg %p105
        %p435 = pneg %p102
        %s436 = sand.u32 %s32, 1
        %s437 = scalar_lea.sflag [#allocation9], %s436
        %s438 = sand.u32 %s118, 1
        %s439 = smul.addr %s438, 8
        %s440 = scalar_lea.vmem [#allocation8], %s439
        %p441 = pneg %p131
        %p442 = pneg %p128
        %p443 = pneg %p152
        %p444 = pneg %p149
        %p445 = pneg %p173
        %p446 = pneg %p170
        %p447 = pneg %p194
        %p448 = pneg %p191
        %p449 = pneg %p215
        %p450 = pneg %p212
        %p451 = pneg %p241
        %p452 = pneg %p238
        %s453 = sand.u32 %s228, 1
        %s454 = scalar_lea.sflag [#allocation4], %s453
        %s455 = sand.u32 %s228, 1
        %s456 = smul.addr %s455, 8
        %s457 = scalar_lea.vmem [#allocation13], %s456
        %v458 = vld [vmem:[%s375] sm:$0xff]
        %v459 = vld [vmem:[%s384] sm:$0xff]
        %v460 = vld [vmem:[%s393] sm:$0xff]
        %v461 = vld [vmem:[%s402] sm:$0xff]
        %v462 = vld [vmem:[#allocation10] sm:$0xff]
        %v463 = vld [vmem:[#allocation10 + $0x8] sm:$0xff]
        %v464 = vld [vmem:[#allocation10 + $0x10] sm:$0xff]
        %v465 = vld [vmem:[#allocation10 + $0x18] sm:$0xff]
        %v466 = vld [vmem:[#allocation10 + $0x20] sm:$0xff]
        %v467 = vld [vmem:[#allocation10 + $0x28] sm:$0xff]
        %v468 = vld [vmem:[#allocation10 + $0x30] sm:$0xff]
        %v469 = vld [vmem:[#allocation10 + $0x38] sm:$0xff]
        %v470 = vld [vmem:[#allocation10 + $0x40] sm:$0xff]
        %v471 = vld [vmem:[#allocation10 + $0x48] sm:$0xff]
        %v472 = vld [vmem:[#allocation10 + $0x50] sm:$0xff]
        %v473 = vld [vmem:[#allocation10 + $0x58] sm:$0xff]
        %v474 = vld [vmem:[#allocation10 + $0x60] sm:$0xff]
        %v475 = vld [vmem:[#allocation10 + $0x68] sm:$0xff]
        %v476 = vld [vmem:[#allocation10 + $0x70] sm:$0xff]
        %v477 = vld [vmem:[#allocation10 + $0x78] sm:$0xff]
        %v478 = vld [vmem:[#allocation11] sm:$0xff]
        %v479 = vld [vmem:[#allocation11 + $0x8] sm:$0xff]
        %v480 = vld [vmem:[#allocation11 + $0x10] sm:$0xff]
        %v481 = vld [vmem:[#allocation11 + $0x18] sm:$0xff]
        %v482 = vld [vmem:[#allocation11 + $0x20] sm:$0xff]
        %v483 = vld [vmem:[#allocation11 + $0x28] sm:$0xff]
        %v484 = vld [vmem:[#allocation11 + $0x30] sm:$0xff]
        %v485 = vld [vmem:[#allocation11 + $0x38] sm:$0xff]
        %v486 = vld [vmem:[#allocation11 + $0x40] sm:$0xff]
        %v487 = vld [vmem:[#allocation11 + $0x48] sm:$0xff]
        %v488 = vld [vmem:[#allocation11 + $0x50] sm:$0xff]
        %v489 = vld [vmem:[#allocation11 + $0x58] sm:$0xff]
        %v490 = vld [vmem:[#allocation11 + $0x60] sm:$0xff]
        %v491 = vld [vmem:[#allocation11 + $0x68] sm:$0xff]
        %v492 = vld [vmem:[#allocation11 + $0x70] sm:$0xff]
        %v493 = vld [vmem:[#allocation11 + $0x78] sm:$0xff]
        %v494 = vld [vmem:[%s6] sm:$0x1]
        %v495 = vld [vmem:[%s7] sm:$0x1]
        %vm496 = vcmp.gt.f32.partialorder %v459, 0.0
        %v497 = vadd.f32 %v459, 1.0
        %v498 = vmul.f32 %v459, 1.442695
        %v499 = vpow.pop %v498
        %v500 = vsel %vm496, %v497, %v499
        %v502 = vlaneseq
        %v503 = vshrl.u32 %v502, 7
        %v504 = vsub.s32 0, %v503
        %v505 = vrot.slane %v494, %v504
        %v507 = vmul.f32 %v500, %v505
        %508 = vmatprep.subr.mxu0 0.0
        %509 = vmatpush1.msra.mxu0 %v493
        %510 = vmatprep.subr.mxu0 0.0
        %511 = vmatpush1.msra.mxu0 %v492
        %512 = vmatprep.subr.mxu0 0.0
        %513 = vmatpush1.msra.mxu0 %v491
        %514 = vmatprep.subr.mxu0 0.0
        %515 = vmatpush1.msra.mxu0 %v490
        %516 = vmatprep.subr.mxu0 0.0
        %517 = vmatpush1.msra.mxu0 %v489
        %518 = vmatprep.subr.mxu0 0.0
        %519 = vmatpush1.msra.mxu0 %v488
        %520 = vmatprep.subr.mxu0 0.0
        %521 = vmatpush1.msra.mxu0 %v487
        %522 = vmatprep.subr.mxu0 0.0
        %523 = vmatpush1.msra.mxu0 %v486
        %524 = vmatprep.subr.mxu0 0.0
        %525 = vmatpush1.msra.mxu0 %v485
        %526 = vmatprep.subr.mxu0 0.0
        %527 = vmatpush1.msra.mxu0 %v484
        %528 = vmatprep.subr.mxu0 0.0
        %529 = vmatpush1.msra.mxu0 %v483
        %530 = vmatprep.subr.mxu0 0.0
        %531 = vmatpush1.msra.mxu0 %v482
        %532 = vmatprep.subr.mxu0 0.0
        %533 = vmatpush1.msra.mxu0 %v481
        %534 = vmatprep.subr.mxu0 0.0
        %535 = vmatpush1.msra.mxu0 %v480
        %536 = vmatprep.subr.mxu0 0.0
        %537 = vmatpush1.msra.mxu0 %v479
        %538 = vmatprep.subr.mxu0 0.0
        %539 = vmatpush1.msra.mxu0 %v478
        %540 = vmatprep.subr.mxu0 0.0
        %541 = vmatpush2.msra.mxu0 0.0
        %542 = vmatprep.subr.mxu0 0.0
        %543 = vmatpush2.msra.mxu0 0.0
        %544 = vmatprep.subr.mxu0 0.0
        %545 = vmatpush2.msra.mxu0 0.0
        %546 = vmatprep.subr.mxu0 0.0
        %547 = vmatpush2.msra.mxu0 0.0
        %548 = vmatprep.subr.mxu0 0.0
        %549 = vmatpush2.msra.mxu0 0.0
        %550 = vmatprep.subr.mxu0 0.0
        %551 = vmatpush2.msra.mxu0 0.0
        %552 = vmatprep.subr.mxu0 0.0
        %553 = vmatpush2.msra.mxu0 0.0
        %554 = vmatprep.subr.mxu0 0.0
        %555 = vmatpush2.msra.mxu0 0.0
        %556 = vmatprep.subr.mxu0 0.0
        %557 = vmatpush2.msra.mxu0 0.0
        %558 = vmatprep.subr.mxu0 0.0
        %559 = vmatpush2.msra.mxu0 0.0
        %560 = vmatprep.subr.mxu0 0.0
        %561 = vmatpush2.msra.mxu0 0.0
        %562 = vmatprep.subr.mxu0 0.0
        %563 = vmatpush2.msra.mxu0 0.0
        %564 = vmatprep.subr.mxu0 0.0
        %565 = vmatpush2.msra.mxu0 0.0
        %566 = vmatprep.subr.mxu0 0.0
        %567 = vmatpush2.msra.mxu0 0.0
        %568 = vmatprep.subr.mxu0 0.0
        %569 = vmatpush2.msra.mxu0 0.0
        %570 = vmatprep.subr.mxu0 0.0
        %571 = vmatpush2.msra.mxu0 0.0
        %572 = vmatprep.mubr.f32.mxu0 0.0
        %573 = vmatmul.mubr.f32.gmra.mxu0 %v507
        %v574 = vpop.f32.mrf.mxu0
        %v575 = vadd.f32 1e-08, %v574
        %v576 = vpop.f32.mrf.mxu0
        %577 = vdwg.mxu0
        %578 = vmatprep.subr.mxu0 0.0
        %579 = vmatpush1.msra.mxu0 %v477
        %580 = vmatprep.subr.mxu0 0.0
        %581 = vmatpush1.msra.mxu0 %v476
        %582 = vmatprep.subr.mxu0 0.0
        %583 = vmatpush1.msra.mxu0 %v475
        %584 = vmatprep.subr.mxu0 0.0
        %585 = vmatpush1.msra.mxu0 %v474
        %586 = vmatprep.subr.mxu0 0.0
        %587 = vmatpush1.msra.mxu0 %v473
        %588 = vmatprep.subr.mxu0 0.0
        %589 = vmatpush1.msra.mxu0 %v472
        %590 = vmatprep.subr.mxu0 0.0
        %591 = vmatpush1.msra.mxu0 %v471
        %592 = vmatprep.subr.mxu0 0.0
        %593 = vmatpush1.msra.mxu0 %v470
        %594 = vmatprep.subr.mxu0 0.0
        %595 = vmatpush1.msra.mxu0 %v469
        %596 = vmatprep.subr.mxu0 0.0
        %597 = vmatpush1.msra.mxu0 %v468
        %598 = vmatprep.subr.mxu0 0.0
        %599 = vmatpush1.msra.mxu0 %v467
        %600 = vmatprep.subr.mxu0 0.0
        %601 = vmatpush1.msra.mxu0 %v466
        %602 = vmatprep.subr.mxu0 0.0
        %603 = vmatpush1.msra.mxu0 %v465
        %604 = vmatprep.subr.mxu0 0.0
        %605 = vmatpush1.msra.mxu0 %v464
        %606 = vmatprep.subr.mxu0 0.0
        %607 = vmatpush1.msra.mxu0 %v463
        %608 = vmatprep.subr.mxu0 0.0
        %609 = vmatpush1.msra.mxu0 %v462
        %610 = vmatprep.subr.mxu0 0.0
        %611 = vmatpush2.msra.mxu0 0.0
        %612 = vmatprep.subr.mxu0 0.0
        %613 = vmatpush2.msra.mxu0 0.0
        %614 = vmatprep.subr.mxu0 0.0
        %615 = vmatpush2.msra.mxu0 0.0
        %616 = vmatprep.subr.mxu0 0.0
        %617 = vmatpush2.msra.mxu0 0.0
        %618 = vmatprep.subr.mxu0 0.0
        %619 = vmatpush2.msra.mxu0 0.0
        %620 = vmatprep.subr.mxu0 0.0
        %621 = vmatpush2.msra.mxu0 0.0
        %622 = vmatprep.subr.mxu0 0.0
        %623 = vmatpush2.msra.mxu0 0.0
        %624 = vmatprep.subr.mxu0 0.0
        %625 = vmatpush2.msra.mxu0 0.0
        %626 = vmatprep.subr.mxu0 0.0
        %627 = vmatpush2.msra.mxu0 0.0
        %628 = vmatprep.subr.mxu0 0.0
        %629 = vmatpush2.msra.mxu0 0.0
        %630 = vmatprep.subr.mxu0 0.0
        %631 = vmatpush2.msra.mxu0 0.0
        %632 = vmatprep.subr.mxu0 0.0
        %633 = vmatpush2.msra.mxu0 0.0
        %634 = vmatprep.subr.mxu0 0.0
        %635 = vmatpush2.msra.mxu0 0.0
        %636 = vmatprep.subr.mxu0 0.0
        %637 = vmatpush2.msra.mxu0 0.0
        %638 = vmatprep.subr.mxu0 0.0
        %639 = vmatpush2.msra.mxu0 0.0
        %640 = vmatprep.subr.mxu0 0.0
        %641 = vmatpush2.msra.mxu0 0.0
        %642 = vmatprep.mubr.f32.mxu0 0.0
        %643 = vmatmul.mubr.f32.gmra.mxu0 %v500
        %v644 = vpop.f32.mrf.mxu0
        %v645 = vadd.f32 0.0, %v644
        %v646 = vpop.f32.mrf.mxu0
        %647 = vdwg.mxu0
        %v648 = vrcp.pop %v575
        %v649 = vmul.f32 %v645, %v648
        %v650 = vsub.f32 %v460, %v649
        %651 = vxpose.xlu0.b32.start [1/16] %v500, 128
        %652 = vxpose.xlu0.b32.cont [2/16] 0.0, 128
        %653 = vxpose.xlu0.b32.cont [3/16] 0.0, 128
        %654 = vxpose.xlu0.b32.cont [4/16] 0.0, 128
        %655 = vxpose.xlu0.b32.cont [5/16] 0.0, 128
        %656 = vxpose.xlu0.b32.cont [6/16] 0.0, 128
        %657 = vxpose.xlu0.b32.cont [7/16] 0.0, 128
        %658 = vxpose.xlu0.b32.cont [8/16] 0.0, 128
        %659 = vxpose.xlu0.b32.cont [9/16] 0.0, 128
        %660 = vxpose.xlu0.b32.cont [10/16] 0.0, 128
        %661 = vxpose.xlu0.b32.cont [11/16] 0.0, 128
        %662 = vxpose.xlu0.b32.cont [12/16] 0.0, 128
        %663 = vxpose.xlu0.b32.cont [13/16] 0.0, 128
        %664 = vxpose.xlu0.b32.cont [14/16] 0.0, 128
        %665 = vxpose.xlu0.b32.cont [15/16] 0.0, 128
        %666 = vxpose.xlu0.b32.end [16/16] 0.0, 128
        %v667 = vpop.trf.xlu0
        %v668 = vpop.trf.xlu0
        %v669 = vpop.trf.xlu0
        %v670 = vpop.trf.xlu0
        %v671 = vpop.trf.xlu0
        %v672 = vpop.trf.xlu0
        %v673 = vpop.trf.xlu0
        %v674 = vpop.trf.xlu0
        %v675 = vpop.trf.xlu0
        %v676 = vpop.trf.xlu0
        %v677 = vpop.trf.xlu0
        %v678 = vpop.trf.xlu0
        %v679 = vpop.trf.xlu0
        %v680 = vpop.trf.xlu0
        %v681 = vpop.trf.xlu0
        %v682 = vpop.trf.xlu0
        %vm683 = vcmask 64512
        %v685 = vsel %vm683, %v667, 0
        %v688 = vsel %vm683, %v668, 0
        %v691 = vsel %vm683, %v669, 0
        %v694 = vsel %vm683, %v670, 0
        %v697 = vsel %vm683, %v671, 0
        %v700 = vsel %vm683, %v672, 0
        %v703 = vsel %vm683, %v673, 0
        %v706 = vsel %vm683, %v674, 0
        %v709 = vsel %vm683, %v675, 0
        %v712 = vsel %vm683, %v676, 0
        %v715 = vsel %vm683, %v677, 0
        %v718 = vsel %vm683, %v678, 0
        %v721 = vsel %vm683, %v679, 0
        %v724 = vsel %vm683, %v680, 0
        %v727 = vsel %vm683, %v681, 0
        %v730 = vsel %vm683, %v682, 0
        %732 = vmatprep.subr.mxu0 0.0
        %733 = vmatpush1.msra.mxu0 0.0
        %734 = vmatprep.subr.mxu0 0.0
        %735 = vmatpush1.msra.mxu0 0.0
        %736 = vmatprep.subr.mxu0 0.0
        %737 = vmatpush1.msra.mxu0 0.0
        %738 = vmatprep.subr.mxu0 0.0
        %739 = vmatpush1.msra.mxu0 0.0
        %740 = vmatprep.subr.mxu0 0.0
        %741 = vmatpush1.msra.mxu0 0.0
        %742 = vmatprep.subr.mxu0 0.0
        %743 = vmatpush1.msra.mxu0 0.0
        %744 = vmatprep.subr.mxu0 0.0
        %745 = vmatpush1.msra.mxu0 0.0
        %746 = vmatprep.subr.mxu0 0.0
        %747 = vmatpush1.msra.mxu0 0.0
        %748 = vmatprep.subr.mxu0 0.0
        %749 = vmatpush1.msra.mxu0 0.0
        %750 = vmatprep.subr.mxu0 0.0
        %751 = vmatpush1.msra.mxu0 0.0
        %752 = vmatprep.subr.mxu0 0.0
        %753 = vmatpush1.msra.mxu0 0.0
        %754 = vmatprep.subr.mxu0 0.0
        %755 = vmatpush1.msra.mxu0 0.0
        %756 = vmatprep.subr.mxu0 0.0
        %757 = vmatpush1.msra.mxu0 0.0
        %758 = vmatprep.subr.mxu0 0.0
        %759 = vmatpush1.msra.mxu0 0.0
        %760 = vmatprep.subr.mxu0 0.0
        %761 = vmatpush1.msra.mxu0 0.0
        %762 = vmatprep.subr.mxu0 0.0
        %763 = vmatpush1.msra.mxu0 %v650
        %764 = vmatprep.subr.mxu0 0.0
        %765 = vmatpush2.msra.mxu0 0.0
        %766 = vmatprep.subr.mxu0 0.0
        %767 = vmatpush2.msra.mxu0 0.0
        %768 = vmatprep.subr.mxu0 0.0
        %769 = vmatpush2.msra.mxu0 0.0
        %770 = vmatprep.subr.mxu0 0.0
        %771 = vmatpush2.msra.mxu0 0.0
        %772 = vmatprep.subr.mxu0 0.0
        %773 = vmatpush2.msra.mxu0 0.0
        %774 = vmatprep.subr.mxu0 0.0
        %775 = vmatpush2.msra.mxu0 0.0
        %776 = vmatprep.subr.mxu0 0.0
        %777 = vmatpush2.msra.mxu0 0.0
        %778 = vmatprep.subr.mxu0 0.0
        %779 = vmatpush2.msra.mxu0 0.0
        %780 = vmatprep.subr.mxu0 0.0
        %781 = vmatpush2.msra.mxu0 0.0
        %782 = vmatprep.subr.mxu0 0.0
        %783 = vmatpush2.msra.mxu0 0.0
        %784 = vmatprep.subr.mxu0 0.0
        %785 = vmatpush2.msra.mxu0 0.0
        %786 = vmatprep.subr.mxu0 0.0
        %787 = vmatpush2.msra.mxu0 0.0
        %788 = vmatprep.subr.mxu0 0.0
        %789 = vmatpush2.msra.mxu0 0.0
        %790 = vmatprep.subr.mxu0 0.0
        %791 = vmatpush2.msra.mxu0 0.0
        %792 = vmatprep.subr.mxu0 0.0
        %793 = vmatpush2.msra.mxu0 0.0
        %794 = vmatprep.subr.mxu0 0.0
        %795 = vmatpush2.msra.mxu0 0.0
        %796 = vmatprep.mubr.f32.mxu0 0.0
        %797 = vmatmul.mubr.f32.gmra.mxu0 %v685
        %v798 = vpop.f32.mrf.mxu0
        %v799 = vadd.f32 0.0, %v798
        %v800 = vpop.f32.mrf.mxu0
        %801 = vmatprep.mubr.f32.mxu0 0.0
        %802 = vmatmul.mubr.f32.gmra.mxu0 %v688
        %v803 = vpop.f32.mrf.mxu0
        %v804 = vadd.f32 0.0, %v803
        %v805 = vpop.f32.mrf.mxu0
        %806 = vmatprep.mubr.f32.mxu0 0.0
        %807 = vmatmul.mubr.f32.gmra.mxu0 %v691
        %v808 = vpop.f32.mrf.mxu0
        %v809 = vadd.f32 0.0, %v808
        %v810 = vpop.f32.mrf.mxu0
        %811 = vmatprep.mubr.f32.mxu0 0.0
        %812 = vmatmul.mubr.f32.gmra.mxu0 %v694
        %v813 = vpop.f32.mrf.mxu0
        %v814 = vadd.f32 0.0, %v813
        %v815 = vpop.f32.mrf.mxu0
        %816 = vmatprep.mubr.f32.mxu0 0.0
        %817 = vmatmul.mubr.f32.gmra.mxu0 %v697
        %v818 = vpop.f32.mrf.mxu0
        %v819 = vadd.f32 0.0, %v818
        %v820 = vpop.f32.mrf.mxu0
        %821 = vmatprep.mubr.f32.mxu0 0.0
        %822 = vmatmul.mubr.f32.gmra.mxu0 %v700
        %v823 = vpop.f32.mrf.mxu0
        %v824 = vadd.f32 0.0, %v823
        %v825 = vpop.f32.mrf.mxu0
        %826 = vmatprep.mubr.f32.mxu0 0.0
        %827 = vmatmul.mubr.f32.gmra.mxu0 %v703
        %v828 = vpop.f32.mrf.mxu0
        %v829 = vadd.f32 0.0, %v828
        %v830 = vpop.f32.mrf.mxu0
        %831 = vmatprep.mubr.f32.mxu0 0.0
        %832 = vmatmul.mubr.f32.gmra.mxu0 %v706
        %v833 = vpop.f32.mrf.mxu0
        %v834 = vadd.f32 0.0, %v833
        %v835 = vpop.f32.mrf.mxu0
        %836 = vmatprep.mubr.f32.mxu0 0.0
        %837 = vmatmul.mubr.f32.gmra.mxu0 %v709
        %v838 = vpop.f32.mrf.mxu0
        %v839 = vadd.f32 0.0, %v838
        %v840 = vpop.f32.mrf.mxu0
        %841 = vmatprep.mubr.f32.mxu0 0.0
        %842 = vmatmul.mubr.f32.gmra.mxu0 %v712
        %v843 = vpop.f32.mrf.mxu0
        %v844 = vadd.f32 0.0, %v843
        %v845 = vpop.f32.mrf.mxu0
        %846 = vmatprep.mubr.f32.mxu0 0.0
        %847 = vmatmul.mubr.f32.gmra.mxu0 %v715
        %v848 = vpop.f32.mrf.mxu0
        %v849 = vadd.f32 0.0, %v848
        %v850 = vpop.f32.mrf.mxu0
        %851 = vmatprep.mubr.f32.mxu0 0.0
        %852 = vmatmul.mubr.f32.gmra.mxu0 %v718
        %v853 = vpop.f32.mrf.mxu0
        %v854 = vadd.f32 0.0, %v853
        %v855 = vpop.f32.mrf.mxu0
        %856 = vmatprep.mubr.f32.mxu0 0.0
        %857 = vmatmul.mubr.f32.gmra.mxu0 %v721
        %v858 = vpop.f32.mrf.mxu0
        %v859 = vadd.f32 0.0, %v858
        %v860 = vpop.f32.mrf.mxu0
        %861 = vmatprep.mubr.f32.mxu0 0.0
        %862 = vmatmul.mubr.f32.gmra.mxu0 %v724
        %v863 = vpop.f32.mrf.mxu0
        %v864 = vadd.f32 0.0, %v863
        %v865 = vpop.f32.mrf.mxu0
        %866 = vmatprep.mubr.f32.mxu0 0.0
        %867 = vmatmul.mubr.f32.gmra.mxu0 %v727
        %v868 = vpop.f32.mrf.mxu0
        %v869 = vadd.f32 0.0, %v868
        %v870 = vpop.f32.mrf.mxu0
        %871 = vmatprep.mubr.f32.mxu0 0.0
        %872 = vmatmul.mubr.f32.gmra.mxu0 %v730
        %v873 = vpop.f32.mrf.mxu0
        %v874 = vadd.f32 0.0, %v873
        %v875 = vpop.f32.mrf.mxu0
        %876 = vdwg.mxu0
        %v877 = vmul.f32 %v799, %v478
        %v878 = vmul.f32 %v804, %v479
        %v879 = vmul.f32 %v809, %v480
        %v880 = vmul.f32 %v814, %v481
        %v881 = vmul.f32 %v819, %v482
        %v882 = vmul.f32 %v824, %v483
        %v883 = vmul.f32 %v829, %v484
        %v884 = vmul.f32 %v834, %v485
        %v885 = vmul.f32 %v839, %v486
        %v886 = vmul.f32 %v844, %v487
        %v887 = vmul.f32 %v849, %v488
        %v888 = vmul.f32 %v854, %v489
        %v889 = vmul.f32 %v859, %v490
        %v890 = vmul.f32 %v864, %v491
        %v891 = vmul.f32 %v869, %v492
        %v892 = vmul.f32 %v874, %v493
        %v893 = vadd.f32 %v462, %v877
        %v894 = vadd.f32 %v463, %v878
        %v895 = vadd.f32 %v464, %v879
        %v896 = vadd.f32 %v465, %v880
        %v897 = vadd.f32 %v466, %v881
        %v898 = vadd.f32 %v467, %v882
        %v899 = vadd.f32 %v468, %v883
        %v900 = vadd.f32 %v469, %v884
        %v901 = vadd.f32 %v470, %v885
        %v902 = vadd.f32 %v471, %v886
        %v903 = vadd.f32 %v472, %v887
        %v904 = vadd.f32 %v473, %v888
        %v905 = vadd.f32 %v474, %v889
        %v906 = vadd.f32 %v475, %v890
        %v907 = vadd.f32 %v476, %v891
        %v908 = vadd.f32 %v477, %v892
        %v909 = vrot.slane %v500, 4
        %v910 = vadd.f32 %v500, %v909
        %v911 = vrot.slane %v910, 2
        %v912 = vadd.f32 %v910, %v911
        %v913 = vrot.slane %v912, 1
        %v914 = vadd.f32 %v912, %v913
        %v915 = vadd.f32 %v494, %v914
        %vm916 = vcmp.gt.f32.partialorder %v458, 0.0
        %v917 = vadd.f32 %v458, 1.0
        %v918 = vmul.f32 %v458, 1.442695
        %v919 = vpow.pop %v918
        %v920 = vsel %vm916, %v917, %v919
        %921 = vmatprep.subr.mxu0 0.0
        %922 = vmatpush1.msra.mxu0 %v908
        %923 = vmatprep.subr.mxu0 0.0
        %924 = vmatpush1.msra.mxu0 %v907
        %925 = vmatprep.subr.mxu0 0.0
        %926 = vmatpush1.msra.mxu0 %v906
        %927 = vmatprep.subr.mxu0 0.0
        %928 = vmatpush1.msra.mxu0 %v905
        %929 = vmatprep.subr.mxu0 0.0
        %930 = vmatpush1.msra.mxu0 %v904
        %931 = vmatprep.subr.mxu0 0.0
        %932 = vmatpush1.msra.mxu0 %v903
        %933 = vmatprep.subr.mxu0 0.0
        %934 = vmatpush1.msra.mxu0 %v902
        %935 = vmatprep.subr.mxu0 0.0
        %936 = vmatpush1.msra.mxu0 %v901
        %937 = vmatprep.subr.mxu0 0.0
        %938 = vmatpush1.msra.mxu0 %v900
        %939 = vmatprep.subr.mxu0 0.0
        %940 = vmatpush1.msra.mxu0 %v899
        %941 = vmatprep.subr.mxu0 0.0
        %942 = vmatpush1.msra.mxu0 %v898
        %943 = vmatprep.subr.mxu0 0.0
        %944 = vmatpush1.msra.mxu0 %v897
        %945 = vmatprep.subr.mxu0 0.0
        %946 = vmatpush1.msra.mxu0 %v896
        %947 = vmatprep.subr.mxu0 0.0
        %948 = vmatpush1.msra.mxu0 %v895
        %949 = vmatprep.subr.mxu0 0.0
        %950 = vmatpush1.msra.mxu0 %v894
        %951 = vmatprep.subr.mxu0 0.0
        %952 = vmatpush1.msra.mxu0 %v893
        %953 = vmatprep.subr.mxu0 0.0
        %954 = vmatpush2.msra.mxu0 0.0
        %955 = vmatprep.subr.mxu0 0.0
        %956 = vmatpush2.msra.mxu0 0.0
        %957 = vmatprep.subr.mxu0 0.0
        %958 = vmatpush2.msra.mxu0 0.0
        %959 = vmatprep.subr.mxu0 0.0
        %960 = vmatpush2.msra.mxu0 0.0
        %961 = vmatprep.subr.mxu0 0.0
        %962 = vmatpush2.msra.mxu0 0.0
        %963 = vmatprep.subr.mxu0 0.0
        %964 = vmatpush2.msra.mxu0 0.0
        %965 = vmatprep.subr.mxu0 0.0
        %966 = vmatpush2.msra.mxu0 0.0
        %967 = vmatprep.subr.mxu0 0.0
        %968 = vmatpush2.msra.mxu0 0.0
        %969 = vmatprep.subr.mxu0 0.0
        %970 = vmatpush2.msra.mxu0 0.0
        %971 = vmatprep.subr.mxu0 0.0
        %972 = vmatpush2.msra.mxu0 0.0
        %973 = vmatprep.subr.mxu0 0.0
        %974 = vmatpush2.msra.mxu0 0.0
        %975 = vmatprep.subr.mxu0 0.0
        %976 = vmatpush2.msra.mxu0 0.0
        %977 = vmatprep.subr.mxu0 0.0
        %978 = vmatpush2.msra.mxu0 0.0
        %979 = vmatprep.subr.mxu0 0.0
        %980 = vmatpush2.msra.mxu0 0.0
        %981 = vmatprep.subr.mxu0 0.0
        %982 = vmatpush2.msra.mxu0 0.0
        %983 = vmatprep.subr.mxu0 0.0
        %984 = vmatpush2.msra.mxu0 0.0
        %985 = vmatprep.mubr.f32.mxu0 0.0
        %986 = vmatmul.mubr.f32.gmra.mxu0 %v920
        %v987 = vpop.f32.mrf.mxu0
        %v988 = vadd.f32 0.0, %v987
        %v989 = vpop.f32.mrf.mxu0
        %990 = vdwg.mxu0
        %v992 = vlaneseq
        %v993 = vshrl.u32 %v992, 7
        %v994 = vsub.s32 0, %v993
        %v995 = vrot.slane %v915, %v994
        %v997 = vmul.f32 %v920, %v995
        %998 = vmatprep.subr.mxu0 0.0
        %999 = vmatpush1.msra.mxu0 %v493
        %1000 = vmatprep.subr.mxu0 0.0
        %1001 = vmatpush1.msra.mxu0 %v492
        %1002 = vmatprep.subr.mxu0 0.0
        %1003 = vmatpush1.msra.mxu0 %v491
        %1004 = vmatprep.subr.mxu0 0.0
        %1005 = vmatpush1.msra.mxu0 %v490
        %1006 = vmatprep.subr.mxu0 0.0
        %1007 = vmatpush1.msra.mxu0 %v489
        %1008 = vmatprep.subr.mxu0 0.0
        %1009 = vmatpush1.msra.mxu0 %v488
        %1010 = vmatprep.subr.mxu0 0.0
        %1011 = vmatpush1.msra.mxu0 %v487
        %1012 = vmatprep.subr.mxu0 0.0
        %1013 = vmatpush1.msra.mxu0 %v486
        %1014 = vmatprep.subr.mxu0 0.0
        %1015 = vmatpush1.msra.mxu0 %v485
        %1016 = vmatprep.subr.mxu0 0.0
        %1017 = vmatpush1.msra.mxu0 %v484
        %1018 = vmatprep.subr.mxu0 0.0
        %1019 = vmatpush1.msra.mxu0 %v483
        %1020 = vmatprep.subr.mxu0 0.0
        %1021 = vmatpush1.msra.mxu0 %v482
        %1022 = vmatprep.subr.mxu0 0.0
        %1023 = vmatpush1.msra.mxu0 %v481
        %1024 = vmatprep.subr.mxu0 0.0
        %1025 = vmatpush1.msra.mxu0 %v480
        %1026 = vmatprep.subr.mxu0 0.0
        %1027 = vmatpush1.msra.mxu0 %v479
        %1028 = vmatprep.subr.mxu0 0.0
        %1029 = vmatpush1.msra.mxu0 %v478
        %1030 = vmatprep.subr.mxu0 0.0
        %1031 = vmatpush2.msra.mxu0 0.0
        %1032 = vmatprep.subr.mxu0 0.0
        %1033 = vmatpush2.msra.mxu0 0.0
        %1034 = vmatprep.subr.mxu0 0.0
        %1035 = vmatpush2.msra.mxu0 0.0
        %1036 = vmatprep.subr.mxu0 0.0
        %1037 = vmatpush2.msra.mxu0 0.0
        %1038 = vmatprep.subr.mxu0 0.0
        %1039 = vmatpush2.msra.mxu0 0.0
        %1040 = vmatprep.subr.mxu0 0.0
        %1041 = vmatpush2.msra.mxu0 0.0
        %1042 = vmatprep.subr.mxu0 0.0
        %1043 = vmatpush2.msra.mxu0 0.0
        %1044 = vmatprep.subr.mxu0 0.0
        %1045 = vmatpush2.msra.mxu0 0.0
        %1046 = vmatprep.subr.mxu0 0.0
        %1047 = vmatpush2.msra.mxu0 0.0
        %1048 = vmatprep.subr.mxu0 0.0
        %1049 = vmatpush2.msra.mxu0 0.0
        %1050 = vmatprep.subr.mxu0 0.0
        %1051 = vmatpush2.msra.mxu0 0.0
        %1052 = vmatprep.subr.mxu0 0.0
        %1053 = vmatpush2.msra.mxu0 0.0
        %1054 = vmatprep.subr.mxu0 0.0
        %1055 = vmatpush2.msra.mxu0 0.0
        %1056 = vmatprep.subr.mxu0 0.0
        %1057 = vmatpush2.msra.mxu0 0.0
        %1058 = vmatprep.subr.mxu0 0.0
        %1059 = vmatpush2.msra.mxu0 0.0
        %1060 = vmatprep.subr.mxu0 0.0
        %1061 = vmatpush2.msra.mxu0 0.0
        %1062 = vmatprep.mubr.f32.mxu0 0.0
        %1063 = vmatmul.mubr.f32.gmra.mxu0 %v997
        %v1064 = vpop.f32.mrf.mxu0
        %v1065 = vadd.f32 1e-08, %v1064
        %v1066 = vpop.f32.mrf.mxu0
        %1067 = vdwg.mxu0
        %v1068 = vrcp.pop %v1065
        %v1069 = vmul.f32 %v988, %v1068
        %v1070 = vxor.u32 %v495, 2147483648
        %v1071 = vmul.f32 %v1070, 1.442695
        %v1072 = vpow.pop %v1071
        %v1073 = vadd.f32 %v1072, 1.0
        %v1074 = vrcp.pop %v1073
        %v1075 = vmul.f32 1.0, %v1074
        %v1077 = vlaneseq
        %v1078 = vshrl.u32 %v1077, 7
        %v1079 = vsub.s32 0, %v1078
        %v1080 = vrot.slane %v1075, %v1079
        %v1082 = vmul.f32 %v1080, %v1069
        %v1083 = vsub.f32 1.0, %v1075
        %v1085 = vlaneseq
        %v1086 = vshrl.u32 %v1085, 7
        %v1087 = vsub.s32 0, %v1086
        %v1088 = vrot.slane %v1083, %v1087
        %v1090 = vmul.f32 %v1088, %v461
        %v1091 = vadd.f32 %v1082, %v1090
        %1092 = vst [vmem:[%s457] sm:$0xff] %v1091
        %s1093 = sand.u32 %s228, 1
        %s1094 = scalar_lea.sflag [#allocation4], %s1093
        %s1095 = sand.u32 %s228, 1
        %s1096 = smul.addr %s1095, 8
        %s1097 = scalar_lea.vmem [#allocation13], %s1096
        // Predicated region
        $region77: #{tpu_custom_call.1} parent=51 // pred_check
          %p1098 = pneg %p238
        $region78: #{tpu_custom_call.1} parent=51 // pred_check_branch
          %1100 = sbr.rel (%p1098) target = $region80
        $region79: #{tpu_custom_call.1} parent=51 // pred_region
          %s1102 = ssub.s32 128, 128
          %1103 = vsyncadd %s1094, %s1102
          %s1104 = smul.addr %s32, 128
          %s1105 = scalar_lea.hbm %s8, %s1104
          %s1107 = sshll.u32 %s1097, 4
          %s1108 = int_to_ptr.vmem [resolvable:$true] %s1107
          %1110 = dma.vmem_to_hbm [thread:$0]  %s1108, 128, %s1105, %s1094
        $region80: #{tpu_custom_call.1} parent=51 // pred_fallthru
          _
      $region52: #{tpu_custom_call.1} parent=5 // pred_fallthru
        _
      %p1111 = scmp.le.s32.totalorder 2, %s27
      // Predicated region
      $region81: #{tpu_custom_call.1} parent=5 // pred_check
        %p1112 = pneg %p1111
      $region82: #{tpu_custom_call.1} parent=5 // pred_check_branch
        %1114 = sbr.rel (%p1112) target = $region84
      $region83: #{tpu_custom_call.1} parent=5 // pred_region
        %s1115 = ssub.s32 %s27, 2
        // Predicated region
        $region85: #{tpu_custom_call.1} parent=83 // pred_check
          %p1116 = pneg %p244
        $region86: #{tpu_custom_call.1} parent=83 // pred_check_branch
          %1118 = sbr.rel (%p1116) target = $region88
        $region87: #{tpu_custom_call.1} parent=83 // pred_region
          %s1119 = sand.u32 %s229, 1
          %s1120 = scalar_lea.sflag [#allocation4], %s1119
          %s1121 = sand.u32 %s229, 1
          %s1122 = smul.addr %s1121, 8
          %s1123 = scalar_lea.vmem [#allocation13], %s1122
          %1124 = dma.done %s1120, 128
        $region88: #{tpu_custom_call.1} parent=83 // pred_fallthru
          _
      $region84: #{tpu_custom_call.1} parent=5 // pred_fallthru
        _
    $region6: #{tpu_custom_call.1} parent=1 // loop_footer
      %s31 = sadd.s32 1, %s27
    $region7: #{tpu_custom_call.1} parent=1 // loop_footer_branch
      %26 = sbr.rel target = $region3
    $region8: #{tpu_custom_call.1} parent=1 // loop_exit
      _
    %1125 = vsyncpa [#allocation3], 1
    %s1126 = scalar_lea.sflag [#allocation3], 1
    %1127 = vsyncpa %s1126, 1
    %1128 = vsyncpa [#allocation6], 1
    %s1129 = scalar_lea.sflag [#allocation6], 1
    %1130 = vsyncpa %s1129, 1
    %1131 = vsyncpa [#allocation9], 1
    %s1132 = scalar_lea.sflag [#allocation9], 1
    %1133 = vsyncpa %s1132, 1
    %1134 = vsyncpa [#allocation12], 1
    %1135 = vsyncpa [#allocation4], 1
    %s1136 = scalar_lea.sflag [#allocation4], 1
    %1137 = vsyncpa %s1136, 1

</llo_original>
